<compile_context>
chip_gen: v7x
topology: tpu7x:2x2x1
jax: 0.10.0
libtpu: 0.0.40
codegen_flags: <defaults>
</compile_context>

<pallas_src>
import jax
import jax.numpy as jnp
from jax.experimental import pallas as pl
from jax.experimental.pallas import tpu as pltpu


def _round_up(x, m):
    return (x + m - 1) // m * m


def _pick_tile(total, unit, cap):
    """Largest multiple of `unit` <= cap that divides `total` (total % unit == 0)."""
    t = min(cap, total)
    t = max(unit, (t // unit) * unit)
    while total % t:
        t -= unit
    return t


def _default_linear_tiles():
    """(tm, tn, tk, vmem_limit_bytes) roofline-sized per TPU generation."""
    kind = ""
    try:
        kind = jax.devices()[0].device_kind.lower()
    except Exception:
        pass
    if "v5 lite" in kind or "v5e" in kind or "v5litepod" in kind:
        # ridge ~240 FLOP/B; 512x512 -> 256 FLOP/B, ~7 MiB VMEM (< 16 MiB scoped)
        return 512, 512, 512, None
    if "v6" in kind or "trillium" in kind:
        # ridge ~650 FLOP/B; 1024x2048 -> ~683 FLOP/B, ~32 MiB VMEM -> raise limit
        return 1024, 2048, 512, 64 * 1024 * 1024
    if "v7" in kind:
        # ridge ~311 FLOP/B; 512x1024 -> ~341 FLOP/B, ~16 MiB (< 32 MiB scoped)
        return 512, 1024, 1024, None
    # Unknown TPU: conservative-but-lane-dense default that fits every scoped limit.
    return 512, 1024, 512, None


# ---------------------------------------------------------------------------
# Branch 1 kernel: fused Linear + scale/shift epilogue, tiled over (M, N, K)
# ---------------------------------------------------------------------------

def _linear_ssf_kernel(x_ref, w_ref, bss_ref, o_ref, acc_ref):
    k = pl.program_id(2)

    @pl.when(k == 0)
    def _():
        acc_ref[...] = jnp.zeros_like(acc_ref)

    # In-kernel bf16 cast of the activation tile (cheap VPU work hidden under
    # the MXU); weights arrive pre-cast to bf16.
    acc_ref[...] += jnp.dot(x_ref[...].astype(jnp.bfloat16), w_ref[...],
                            preferred_element_type=jnp.float32)

    @pl.when(k == pl.num_programs(2) - 1)
    def _():
        bss = bss_ref[...]                      # (8, tn): rows 0/1/2 = b/scale/shift
        y = acc_ref[...] + bss[0:1, :]
        o_ref[...] = (y * bss[1:2, :] + bss[2:3, :]).astype(o_ref.dtype)


def scale_shift_linear(x, w_t, bias, scale, shift, *,
                       tm=None, tn=None, tk=None,
                       out_dtype=None, vmem_limit_bytes=None):
    """Branch 1: o = (x @ W + b) * scale + shift, scale/shift over last dim.

    x: (B, S, K)   w_t: (K, N) (PyTorch weight transposed)
    bias/scale/shift: (N,)     returns (B, S, N) in `out_dtype` (default x.dtype).
    """
    d_tm, d_tn, d_tk, d_vmem = _default_linear_tiles()
    tm = tm or d_tm
    tn = tn or d_tn
    tk = tk or d_tk
    if vmem_limit_bytes is None:
        vmem_limit_bytes = d_vmem

    B, S, K = x.shape
    N = w_t.shape[1]
    M = B * S
    out_dtype = out_dtype or x.dtype

    # Lane-dense tiles (multiples of 128 on N/K, 8 on M), clipped to the padded
    # problem size so tiny shapes still compile.
    tm = min(tm, _round_up(M, 8))
    tn = min(tn, _round_up(N, 128))
    tk = min(tk, _round_up(K, 128))
    Mp, Np, Kp = _round_up(M, tm), _round_up(N, tn), _round_up(K, tk)

    # x stays in its original dtype (cast to bf16 in-kernel); pad only if ragged.
    x2 = x.reshape(M, K)
    if (Mp, Kp) != (M, K):
        x2 = jnp.pad(x2, ((0, Mp - M), (0, Kp - K)))

    # Weights: one-time bf16 cast so repeated HBM reads are half-width.
    w2 = w_t.astype(jnp.bfloat16)
    if (Kp, Np) != (K, N):
        w2 = jnp.pad(w2, ((0, Kp - K), (0, Np - N)))

    # bias / scale / shift stacked into one (8, Np) slab (3 used rows).
    bss = jnp.zeros((8, Np), jnp.float32)
    bss = bss.at[0, :N].set(bias.astype(jnp.float32))
    bss = bss.at[1, :N].set(scale.astype(jnp.float32))
    bss = bss.at[2, :N].set(shift.astype(jnp.float32))

    grid = (Mp // tm, Np // tn, Kp // tk)
    n_i, n_j = grid[0], grid[1]
    x_bytes = jnp.dtype(x2.dtype).itemsize
    o_bytes = jnp.dtype(out_dtype).itemsize

    cp_kwargs = dict(dimension_semantics=("parallel", "parallel", "arbitrary"))
    if vmem_limit_bytes is not None:
        cp_kwargs["vmem_limit_bytes"] = vmem_limit_bytes

    out = pl.pallas_call(
        _linear_ssf_kernel,
        out_shape=jax.ShapeDtypeStruct((Mp, Np), out_dtype),
        grid_spec=pltpu.PrefetchScalarGridSpec(
            num_scalar_prefetch=0,
            grid=grid,
            in_specs=[
                pl.BlockSpec((tm, tk), lambda i, j, k: (i, k)),
                pl.BlockSpec((tk, tn), lambda i, j, k: (k, j)),
                pl.BlockSpec((8, tn), lambda i, j, k: (0, j)),
            ],
            out_specs=pl.BlockSpec((tm, tn), lambda i, j, k: (i, j)),
            scratch_shapes=[pltpu.VMEM((tm, tn), jnp.float32)],
        ),
        compiler_params=pltpu.CompilerParams(**cp_kwargs),
        cost_estimate=pl.CostEstimate(
            flops=2 * Mp * Np * Kp,
            transcendentals=0,
            # account for re-reads: x is streamed once per N-tile, w once per M-tile
            bytes_accessed=(Mp * Kp * x_bytes * n_j
                            + Kp * Np * 2 * n_i
                            + Mp * Np * o_bytes)),
    )(x2, w2, bss)

    return out[:M, :N].reshape(B, S, N)


# ---------------------------------------------------------------------------
# Branch 2 kernel: NCHW per-channel affine over a flattened (N*C, H*W) view
# ---------------------------------------------------------------------------

def _rowwise_ssf_kernel(x_ref, sc_ref, sh_ref, o_ref):
    x = x_ref[...].astype(jnp.float32)           # (tr, thw)
    o_ref[...] = (x * sc_ref[...] + sh_ref[...]).astype(o_ref.dtype)


def scale_shift_nchw(y, scale, shift, *, tr_max=256, thw_max=4096):
    """Branch 2: y is NCHW, y.shape[1] == scale.shape[0].

    Equivalent to  y * scale.view(1,-1,1,1) + shift.view(1,-1,1,1).
    """
    N, C, H, W = y.shape
    if C != scale.shape[0]:
        raise ValueError("Input tensors do not match the shape of the scale factors.")
    HW = H * W
    R = N * C

    y2 = y.reshape(R, HW)
    # Per-row scale/shift slabs: row r of the (N*C) flattening has channel r % C.
    sc = jnp.tile(scale.astype(jnp.float32), (N,)).reshape(R, 1)
    sh = jnp.tile(shift.astype(jnp.float32), (N,)).reshape(R, 1)

    # Pad to (8, 128) granularity when ragged (keeps stores unmasked / lane-dense).
    Rp, HWp = _round_up(R, 8), _round_up(HW, 128)
    if (Rp, HWp) != (R, HW):
        y2 = jnp.pad(y2, ((0, Rp - R), (0, HWp - HW)))
    if Rp != R:
        sc = jnp.pad(sc, ((0, Rp - R), (0, 0)))
        sh = jnp.pad(sh, ((0, Rp - R), (0, 0)))

    # ~1-4 MiB per grid step (HBM-roofline friendly) while staying well under
    # the v7x 32 MiB scoped-VMEM default with double-buffered in+out blocks.
    tr = _pick_tile(Rp, 8, tr_max)
    thw = _pick_tile(HWp, 128, thw_max)
    grid = (Rp // tr, HWp // thw)

    out = pl.pallas_call(
        _rowwise_ssf_kernel,
        out_shape=jax.ShapeDtypeStruct((Rp, HWp), y.dtype),
        grid=grid,
        in_specs=[
            pl.BlockSpec((tr, thw), lambda r, h: (r, h)),
            pl.BlockSpec((tr, 1), lambda r, h: (r, 0)),
            pl.BlockSpec((tr, 1), lambda r, h: (r, 0)),
        ],
        out_specs=pl.BlockSpec((tr, thw), lambda r, h: (r, h)),
        compiler_params=pltpu.CompilerParams(
            dimension_semantics=("parallel", "parallel")),
    )(y2, sc, sh)

    return out[:R, :HW].reshape(N, C, H, W)


# ---------------------------------------------------------------------------
# Main
# ---------------------------------------------------------------------------

if __name__ == "__main__":
    key = jax.random.PRNGKey(0)
    k_x, k_w, k_b, k_sc, k_sh, k_y, k_sc2, k_sh2 = jax.random.split(key, 8)

    # ----- Branch 1: wrapped nn.Linear(K -> dim), scale/shift on last dim ----
    B, S, K, dim = 2, 8, 32, 32
    x = jax.random.normal(k_x, (B, S, K), dtype=jnp.float32)
    w = jax.random.normal(k_w, (dim, K), dtype=jnp.float32) * 0.02  # (out, in)
    bias = jax.random.normal(k_b, (dim,), dtype=jnp.float32) * 0.02
    scale = 1.0 + 0.2 * jax.random.normal(k_sc, (dim,), dtype=jnp.float32)
    shift = 0.2 * jax.random.normal(k_sh, (dim,), dtype=jnp.float32)

    out1 = scale_shift_linear(x, w.T, bias, scale, shift)
    out1 = jax.block_until_ready(out1)

    ref1 = (jnp.einsum("bsk,nk->bsn", x, w) + bias) * scale + shift
    assert out1.shape == (B, S, dim)
    # bf16 MXU operands -> loosened tolerance vs f32 reference.
    assert jnp.allclose(out1, ref1, atol=1e-2, rtol=1e-2)

    # ----- Branch 2: NCHW activation, scale/shift on channel dim -------------
    Nb, C, H, Wd = 2, 4, 16, 16
    y = jax.random.normal(k_y, (Nb, C, H, Wd), dtype=jnp.float32)
    scale_c = 1.0 + 0.2 * jax.random.normal(k_sc2, (C,), dtype=jnp.float32)
    shift_c = 0.2 * jax.random.normal(k_sh2, (C,), dtype=jnp.float32)

    out2 = scale_shift_nchw(y, scale_c, shift_c)
    out2 = jax.block_until_ready(out2)

    ref2 = y * scale_c.reshape(1, -1, 1, 1) + shift_c.reshape(1, -1, 1, 1)
    assert out2.shape == (Nb, C, H, Wd)
    assert jnp.allclose(out2, ref2, atol=1e-5, rtol=1e-5)

    print("KERNEL_OK")
</pallas_src>

<mosaic_0001>
module attributes {stable_mosaic.version = 11 : i64} {
  func.func @_linear_ssf_kernel(%arg0: i32, %arg1: i32, %arg2: i32, %arg3: memref<16x128xf32, #tpu.memory_space<vmem>>, %arg4: memref<128x128xbf16, #tpu.memory_space<vmem>>, %arg5: memref<8x128xf32, #tpu.memory_space<vmem>>, %arg6: memref<16x128xf32, #tpu.memory_space<vmem>>, %arg7: memref<16x128xf32, #tpu.memory_space<vmem>>) attributes {dimension_semantics = [#tpu.dimension_semantics<parallel>, #tpu.dimension_semantics<parallel>, #tpu.dimension_semantics<arbitrary>], iteration_bounds = array<i64: 1, 1, 1>, scalar_prefetch = 0 : i64, scratch_operands = 1 : i64, tpu.core_type = #tpu.core_type<tc>, window_params = [{transform_indices = @transform_0, window_bounds = array<i64: 16, 128>}, {transform_indices = @transform_1, window_bounds = array<i64: 128, 128>}, {transform_indices = @transform_2, window_bounds = array<i64: 8, 128>}, {transform_indices = @transform_3, window_bounds = array<i64: 16, 128>}]} {
    %c0_i32 = arith.constant 0 : i32
    %0 = arith.cmpi eq, %arg2, %c0_i32 : i32
    %1 = arith.extui %0 : i1 to i32
    %c0_i32_0 = arith.constant 0 : i32
    %2 = arith.cmpi ne, %1, %c0_i32_0 : i32
    scf.if %2 {
      %cst_10 = arith.constant 0.000000e+00 : f32
      %13 = vector.broadcast %cst_10 : f32 to vector<16x128xf32>
      %c0_11 = arith.constant 0 : index
      %c0_12 = arith.constant 0 : index
      %14 = vector.load %arg7[%c0_11, %c0_12] : memref<16x128xf32, #tpu.memory_space<vmem>>, vector<16x128xf32>
      tpu.vector_store %arg7[%c0_11, %c0_12], %13 {strides = array<i32>} : memref<16x128xf32, #tpu.memory_space<vmem>>, vector<16x128xf32>,
    } else {
    }
    %c0 = arith.constant 0 : index
    %c0_1 = arith.constant 0 : index
    %3 = vector.load %arg7[%c0, %c0_1] : memref<16x128xf32, #tpu.memory_space<vmem>>, vector<16x128xf32>
    %c0_2 = arith.constant 0 : index
    %c0_3 = arith.constant 0 : index
    %4 = vector.load %arg3[%c0_2, %c0_3] : memref<16x128xf32, #tpu.memory_space<vmem>>, vector<16x128xf32>
    %5 = arith.truncf %4 : vector<16x128xf32> to vector<16x128xbf16>
    %c0_4 = arith.constant 0 : index
    %c0_5 = arith.constant 0 : index
    %6 = vector.load %arg4[%c0_4, %c0_5] : memref<128x128xbf16, #tpu.memory_space<vmem>>, vector<128x128xbf16>
    %cst = arith.constant dense<0.000000e+00> : vector<16x128xf32>
    %7 = tpu.matmul %5, %6, %cst {dimension_numbers = #tpu.dot_dimension_numbers<[1], [0], [0], [1], [0, 0, 1, 1], [], []>} : vector<16x128xbf16>, vector<128x128xbf16>, vector<16x128xf32> -> vector<16x128xf32>
    %8 = arith.addf %3, %7 : vector<16x128xf32>
    %c0_6 = arith.constant 0 : index
    %c0_7 = arith.constant 0 : index
    %9 = vector.load %arg7[%c0_6, %c0_7] : memref<16x128xf32, #tpu.memory_space<vmem>>, vector<16x128xf32>
    tpu.vector_store %arg7[%c0_6, %c0_7], %8 {strides = array<i32>} : memref<16x128xf32, #tpu.memory_space<vmem>>, vector<16x128xf32>,
    %c0_i32_8 = arith.constant 0 : i32
    %10 = arith.cmpi eq, %arg2, %c0_i32_8 : i32
    %11 = arith.extui %10 : i1 to i32
    %c0_i32_9 = arith.constant 0 : i32
    %12 = arith.cmpi ne, %11, %c0_i32_9 : i32
    scf.if %12 {
      %c0_10 = arith.constant 0 : index
      %c0_11 = arith.constant 0 : index
      %13 = vector.load %arg5[%c0_10, %c0_11] : memref<8x128xf32, #tpu.memory_space<vmem>>, vector<8x128xf32>
      %c0_12 = arith.constant 0 : index
      %c0_13 = arith.constant 0 : index
      %14 = vector.load %arg7[%c0_12, %c0_13] : memref<16x128xf32, #tpu.memory_space<vmem>>, vector<16x128xf32>
      %15 = vector.extract_strided_slice %13 {offsets = [0, 0], sizes = [1, 128], strides = [1, 1]} : vector<8x128xf32> to vector<1x128xf32>
      %16 = vector.broadcast %15 : vector<1x128xf32> to vector<16x128xf32>
      %17 = arith.addf %14, %16 : vector<16x128xf32>
      %18 = vector.extract_strided_slice %13 {offsets = [1, 0], sizes = [1, 128], strides = [1, 1]} : vector<8x128xf32> to vector<1x128xf32>
      %19 = vector.broadcast %18 : vector<1x128xf32> to vector<16x128xf32>
      %20 = arith.mulf %17, %19 : vector<16x128xf32>
      %21 = vector.extract_strided_slice %13 {offsets = [2, 0], sizes = [1, 128], strides = [1, 1]} : vector<8x128xf32> to vector<1x128xf32>
      %22 = vector.broadcast %21 : vector<1x128xf32> to vector<16x128xf32>
      %23 = arith.addf %20, %22 : vector<16x128xf32>
      %c0_14 = arith.constant 0 : index
      %c0_15 = arith.constant 0 : index
      %24 = vector.load %arg6[%c0_14, %c0_15] : memref<16x128xf32, #tpu.memory_space<vmem>>, vector<16x128xf32>
      tpu.vector_store %arg6[%c0_14, %c0_15], %23 {strides = array<i32>} : memref<16x128xf32, #tpu.memory_space<vmem>>, vector<16x128xf32>,
    } else {
    }
    return
  }
  func.func @transform_0(%arg0: i32, %arg1: i32, %arg2: i32) -> (i32, i32) {
    %c0_i32 = arith.constant 0 : i32
    return %arg0, %arg2 : i32, i32
  }
  func.func @transform_1(%arg0: i32, %arg1: i32, %arg2: i32) -> (i32, i32) {
    %c0_i32 = arith.constant 0 : i32
    return %arg2, %arg1 : i32, i32
  }
  func.func @transform_2(%arg0: i32, %arg1: i32, %arg2: i32) -> (i32, i32) {
    %c0_i32 = arith.constant 0 : i32
    %c0_i32_0 = arith.constant 0 : i32
    return %c0_i32, %arg1 : i32, i32
  }
  func.func @transform_3(%arg0: i32, %arg1: i32, %arg2: i32) -> (i32, i32) {
    %c0_i32 = arith.constant 0 : i32
    return %arg0, %arg1 : i32, i32
  }
}

</mosaic_0001>

<llo_original>
// kernel: tpu_custom_call.1
$region0: #{tpu_custom_call.1}
  #allocation0 [shape = 'u32[]', space=smem, size = 0x4, offset = 0x4, fixed_abs, tag = 'smem constant byte address 0x4 - core index']
  #allocation1 [shape = 'u32[144,128]{1,0:T(1,128)}', space=vmem, size = 0x12000, scoped, tag = 'internal scratch']
  #allocation2 [shape = 'f32[16,128]{1,0:T(8,128)}', space=vmem, size = 0x2000, scoped, tag = 'scratch operand']
  %s0 = inlined_call_operand.hbm [shape: f32[16,128], index: 0, kind: input, shape index: {}]
  %s1 = inlined_call_operand.hbm [shape: bf16[128,128], index: 1, kind: input, shape index: {}]
  %s2 = inlined_call_operand.hbm [shape: f32[8,128], index: 2, kind: input, shape index: {}]
  %s3 = inlined_call_operand.hbm [shape: f32[16,128], index: 3, kind: output, shape index: {}]
  %s4 = sld [smem:[#allocation0]]
  $region42: #{tpu_custom_call.1} parent=0
    _
  %s6 = ssub.s32 1, %s4
  %s7 = scalar_select 0, %s6, %s4
  $region1: #{tpu_custom_call.1} parent=0
    #allocation3 [shape = 'u8[8192]{0}', space=vmem, size = 0x2000, scoped, tag = 'input window, operand 0, single buffered']
    #allocation4 [shape = 's32[1]{0}', space=sflag, size = 0x4, scoped, tag = 'scoped memory for tpu_custom_call.1']
    #allocation5 [shape = 's32[1]{0}', space=sflag, size = 0x4, scoped, tag = 'scoped memory for tpu_custom_call.1']
    #allocation6 [shape = 'u8[32768]{0}', space=vmem, size = 0x8000, scoped, tag = 'input window, operand 1, single buffered']
    #allocation7 [shape = 's32[1]{0}', space=sflag, size = 0x4, scoped, tag = 'scoped memory for tpu_custom_call.1']
    #allocation8 [shape = 'u8[4096]{0}', space=vmem, size = 0x1000, scoped, tag = 'input window, operand 2, single buffered']
    #allocation9 [shape = 'u8[8192]{0}', space=vmem, size = 0x2000, scoped, tag = 'output window, operand 0, single buffered']
    %8 = vsyncpa [#allocation4], 0
    %9 = vsyncpa [#allocation7], 0
    %10 = vsyncpa [#allocation5], 0
    // Predicated region
    $region2: #{tpu_custom_call.1} parent=1 // pred_check
      _
    $region3: #{tpu_custom_call.1} parent=1 // pred_check_branch
      %12 = sbr.rel (0) target = $region5
    $region4: #{tpu_custom_call.1} parent=1 // pred_region
      %s14 = ssub.s32 256, 256
      %15 = vsyncadd [#allocation4], %s14
      %s16 = sshll.u32 [#allocation3], 4
      %s17 = int_to_ptr.vmem [resolvable:$true] %s16
      %22 = dma.hbm_to_vmem [thread:$0]  %s0, 256, %s17, [#allocation4], 128, 128, 8
    $region5: #{tpu_custom_call.1} parent=1 // pred_fallthru
      _
    // Predicated region
    $region6: #{tpu_custom_call.1} parent=1 // pred_check
      _
    $region7: #{tpu_custom_call.1} parent=1 // pred_check_branch
      %24 = sbr.rel (0) target = $region9
    $region8: #{tpu_custom_call.1} parent=1 // pred_region
      %s26 = ssub.s32 1024, 1024
      %27 = vsyncadd [#allocation7], %s26
      %s28 = sshll.u32 [#allocation6], 4
      %s29 = int_to_ptr.vmem [resolvable:$true] %s28
      %34 = dma.hbm_to_vmem [thread:$0]  %s1, 1024, %s29, [#allocation7], 64, 64, 4
    $region9: #{tpu_custom_call.1} parent=1 // pred_fallthru
      _
    // Predicated region
    $region10: #{tpu_custom_call.1} parent=1 // pred_check
      _
    $region11: #{tpu_custom_call.1} parent=1 // pred_check_branch
      %36 = sbr.rel (0) target = $region13
    $region12: #{tpu_custom_call.1} parent=1 // pred_region
      %s38 = ssub.s32 128, 128
      %39 = vsyncadd [#allocation7], %s38
      %s41 = sshll.u32 [#allocation8], 4
      %s42 = int_to_ptr.vmem [resolvable:$true] %s41
      %44 = dma.hbm_to_vmem [thread:$0]  %s2, 128, %s42, [#allocation7]
    $region13: #{tpu_custom_call.1} parent=1 // pred_fallthru
      _
    // Predicated region
    $region14: #{tpu_custom_call.1} parent=1 // pred_check
      _
    $region15: #{tpu_custom_call.1} parent=1 // pred_check_branch
      %46 = sbr.rel (0) target = $region17
    $region16: #{tpu_custom_call.1} parent=1 // pred_region
      %47 = dma.done [#allocation4], 256
    $region17: #{tpu_custom_call.1} parent=1 // pred_fallthru
      _
    // Predicated region
    $region18: #{tpu_custom_call.1} parent=1 // pred_check
      _
    $region19: #{tpu_custom_call.1} parent=1 // pred_check_branch
      %49 = sbr.rel (0) target = $region21
    $region20: #{tpu_custom_call.1} parent=1 // pred_region
      %50 = dma.done [#allocation7], 1024
    $region21: #{tpu_custom_call.1} parent=1 // pred_fallthru
      _
    // Predicated region
    $region22: #{tpu_custom_call.1} parent=1 // pred_check
      _
    $region23: #{tpu_custom_call.1} parent=1 // pred_check_branch
      %52 = sbr.rel (0) target = $region25
    $region24: #{tpu_custom_call.1} parent=1 // pred_region
      %53 = dma.done [#allocation7], 128
    $region25: #{tpu_custom_call.1} parent=1 // pred_fallthru
      _
    %p55 = scmp.eq.s32.totalorder 0, 0
    // Predicated region
    $region26: #{tpu_custom_call.1} parent=1 // pred_check
      %p56 = pneg %p55
    $region27: #{tpu_custom_call.1} parent=1 // pred_check_branch
      %58 = sbr.rel (%p56) target = $region29
    $region28: #{tpu_custom_call.1} parent=1 // pred_region
      %59 = vst [vmem:[#allocation2] sm:$0xff] 0.0
      %60 = vst [vmem:[#allocation2 + $0x8] sm:$0xff] 0.0
    $region29: #{tpu_custom_call.1} parent=1 // pred_fallthru
      _
    %v61 = vld [vmem:[#allocation2] sm:$0xff]
    %v62 = vld [vmem:[#allocation2 + $0x8] sm:$0xff]
    %v63 = vld [vmem:[#allocation3] sm:$0xff]
    %v64 = vld [vmem:[#allocation3 + $0x8] sm:$0xff]
    %v65 = vpack.c.bf16 %v64, %v63
    %v66 = vld [vmem:[#allocation6] sm:$0xf]
    %v67 = vld [vmem:[#allocation6 + $0x4] sm:$0xf]
    %v68 = vld [vmem:[#allocation6 + $0x8] sm:$0xf]
    %v69 = vld [vmem:[#allocation6 + $0xc] sm:$0xf]
    %v70 = vld [vmem:[#allocation6 + $0x10] sm:$0xf]
    %v71 = vld [vmem:[#allocation6 + $0x14] sm:$0xf]
    %v72 = vld [vmem:[#allocation6 + $0x18] sm:$0xf]
    %v73 = vld [vmem:[#allocation6 + $0x1c] sm:$0xf]
    %v74 = vld [vmem:[#allocation6 + $0x20] sm:$0xf]
    %v75 = vld [vmem:[#allocation6 + $0x24] sm:$0xf]
    %v76 = vld [vmem:[#allocation6 + $0x28] sm:$0xf]
    %v77 = vld [vmem:[#allocation6 + $0x2c] sm:$0xf]
    %v78 = vld [vmem:[#allocation6 + $0x30] sm:$0xf]
    %v79 = vld [vmem:[#allocation6 + $0x34] sm:$0xf]
    %v80 = vld [vmem:[#allocation6 + $0x38] sm:$0xf]
    %v81 = vld [vmem:[#allocation6 + $0x3c] sm:$0xf]
    %v98 = vunpack.c.l.b16 %v66
    %v99 = vunpack.c.l.b16 %v67
    %v100 = vunpack.c.l.b16 %v68
    %v101 = vunpack.c.l.b16 %v69
    %v102 = vunpack.c.l.b16 %v70
    %v103 = vunpack.c.l.b16 %v71
    %v104 = vunpack.c.l.b16 %v72
    %v105 = vunpack.c.l.b16 %v73
    %v106 = vunpack.c.l.b16 %v74
    %v107 = vunpack.c.l.b16 %v75
    %v108 = vunpack.c.l.b16 %v76
    %v109 = vunpack.c.l.b16 %v77
    %v110 = vunpack.c.l.b16 %v78
    %v111 = vunpack.c.l.b16 %v79
    %v112 = vunpack.c.l.b16 %v80
    %v113 = vunpack.c.l.b16 %v81
    %v114 = vpack.c.b16 %v99, %v98
    %v115 = vpack.c.b16 %v101, %v100
    %v116 = vpack.c.b16 %v103, %v102
    %v117 = vpack.c.b16 %v105, %v104
    %v118 = vpack.c.b16 %v107, %v106
    %v119 = vpack.c.b16 %v109, %v108
    %v120 = vpack.c.b16 %v111, %v110
    %v121 = vpack.c.b16 %v113, %v112
    %130 = vmatprep.subr.bf16.mxu0 0
    %131 = vmatpush1.bf16.msra.mxu0 %v114
    %132 = vmatprep.subr.bf16.mxu0 0
    %133 = vmatpush1.bf16.msra.mxu0 %v115
    %134 = vmatprep.subr.bf16.mxu0 0
    %135 = vmatpush1.bf16.msra.mxu0 %v116
    %136 = vmatprep.subr.bf16.mxu0 0
    %137 = vmatpush1.bf16.msra.mxu0 %v117
    %138 = vmatprep.subr.bf16.mxu0 0
    %139 = vmatpush1.bf16.msra.mxu0 %v118
    %140 = vmatprep.subr.bf16.mxu0 0
    %141 = vmatpush1.bf16.msra.mxu0 %v119
    %142 = vmatprep.subr.bf16.mxu0 0
    %143 = vmatpush1.bf16.msra.mxu0 %v120
    %144 = vmatprep.subr.bf16.mxu0 0
    %145 = vmatpush1.bf16.msra.mxu0 %v121
    %146 = vmatprep.subr.bf16.mxu0 0
    %147 = vmatpush1.bf16.msra.mxu0 0
    %148 = vmatprep.subr.bf16.mxu0 0
    %149 = vmatpush1.bf16.msra.mxu0 0
    %150 = vmatprep.subr.bf16.mxu0 0
    %151 = vmatpush1.bf16.msra.mxu0 0
    %152 = vmatprep.subr.bf16.mxu0 0
    %153 = vmatpush1.bf16.msra.mxu0 0
    %154 = vmatprep.subr.bf16.mxu0 0
    %155 = vmatpush1.bf16.msra.mxu0 0
    %156 = vmatprep.subr.bf16.mxu0 0
    %157 = vmatpush1.bf16.msra.mxu0 0
    %158 = vmatprep.subr.bf16.mxu0 0
    %159 = vmatpush1.bf16.msra.mxu0 0
    %160 = vmatprep.subr.bf16.mxu0 0
    %161 = vmatpush1.bf16.msra.mxu0 0
    %162 = vmatprep.mubr.bf16.mxu0 0
    %163 = vmatmul.mubr.bf16.gmra.mrb[0].mxu0 %v65
    %v164 = vpop.f32.mrb[0].mxu0
    %v165 = vadd.f32 0.0, %v164
    %v166 = vpop.f32.mrb[0].mxu0
    %v167 = vpop.f32.mrb[0].mxu0
    %v168 = vadd.f32 0.0, %v167
    %v169 = vpop.f32.mrb[0].mxu0
    %170 = vdwg.mxu0
    %v171 = vadd.f32 %v61, %v165
    %v172 = vadd.f32 %v62, %v168
    %173 = vst [vmem:[#allocation2] sm:$0xff] %v171
    %174 = vst [vmem:[#allocation2 + $0x8] sm:$0xff] %v172
    // Predicated region
    $region30: #{tpu_custom_call.1} parent=1 // pred_check
      %p175 = pneg %p55
    $region31: #{tpu_custom_call.1} parent=1 // pred_check_branch
      %177 = sbr.rel (%p175) target = $region33
    $region32: #{tpu_custom_call.1} parent=1 // pred_region
      %v178 = vld [vmem:[#allocation8] sm:$0xff]
      %v179 = vld [vmem:[#allocation2] sm:$0xff]
      %v180 = vld [vmem:[#allocation2 + $0x8] sm:$0xff]
      %v181 = vlaneseq
      %v182 = vshrl.u32 %v181, 7
      %v183 = vsub.s32 0, %v182
      %v184 = vrot.slane %v178, %v183
      %v185 = vadd.f32 %v179, %v184
      %v186 = vadd.f32 %v180, %v184
      %v187 = vlaneseq
      %v188 = vshrl.u32 %v187, 7
      %v189 = vsub.s32 1, %v188
      %v190 = vrot.slane %v178, %v189
      %v191 = vmul.f32 %v185, %v190
      %v192 = vmul.f32 %v186, %v190
      %v193 = vlaneseq
      %v194 = vshrl.u32 %v193, 7
      %v195 = vsub.s32 2, %v194
      %v196 = vrot.slane %v178, %v195
      %v197 = vadd.f32 %v191, %v196
      %v198 = vadd.f32 %v192, %v196
      %199 = vst [vmem:[#allocation9] sm:$0xff] %v197
      %200 = vst [vmem:[#allocation9 + $0x8] sm:$0xff] %v198
    $region33: #{tpu_custom_call.1} parent=1 // pred_fallthru
      _
    // Predicated region
    $region34: #{tpu_custom_call.1} parent=1 // pred_check
      _
    $region35: #{tpu_custom_call.1} parent=1 // pred_check_branch
      %202 = sbr.rel (0) target = $region37
    $region36: #{tpu_custom_call.1} parent=1 // pred_region
      %s204 = ssub.s32 256, 256
      %205 = vsyncadd [#allocation5], %s204
      %s206 = sshll.u32 [#allocation9], 4
      %s207 = int_to_ptr.vmem [resolvable:$true] %s206
      %212 = dma.vmem_to_hbm [thread:$0]  %s207, 256, %s3, [#allocation5], 128, 128, 8
    $region37: #{tpu_custom_call.1} parent=1 // pred_fallthru
      _
    // Predicated region
    $region38: #{tpu_custom_call.1} parent=1 // pred_check
      _
    $region39: #{tpu_custom_call.1} parent=1 // pred_check_branch
      %214 = sbr.rel (0) target = $region41
    $region40: #{tpu_custom_call.1} parent=1 // pred_region
      %215 = dma.done [#allocation5], 256
    $region41: #{tpu_custom_call.1} parent=1 // pred_fallthru
      _
    %216 = vsyncpa [#allocation4], 1
    %217 = vsyncpa [#allocation7], 1
    %218 = vsyncpa [#allocation5], 1

</llo_original>
